<compile_context>
chip_gen: v5e
topology: v5e:2x2
jax: 0.10.0
libtpu: 0.0.40
codegen_flags: <defaults>
</compile_context>

<pallas_src>
import numpy as np
import jax
import jax.numpy as jnp
from jax import lax
from jax.experimental import pallas as pl
from jax.experimental.pallas import tpu as pltpu


def _num_groups(out_channels):
    for g in (16, 8, 4, 2):
        if out_channels % g == 0:
            return g
    return 1


def _round_up(x, m):
    return ((x + m - 1) // m) * m


def _vmem_limit_bytes(block_bytes):
    """Pick a VMEM limit from the device's actual capacity (v7x has only 64 MiB)."""
    try:
        cap = int(getattr(pltpu.get_tpu_info(), "vmem_capacity_bytes", 64 << 20))
    except Exception:  # conservative fallback if the query is unavailable
        cap = 64 << 20
    want = 4 * block_bytes + (8 << 20)            # double-buffered blocks + headroom
    return int(min(max(want, 32 << 20), (cap * 3) // 4))


def _make_kernel(cin, cout, h, w, k, ng, off):
    pad = k // 2
    hw = h * w
    cpg = cout // ng
    inv_n = 1.0 / float(cpg * hw)
    eps = 1e-5

    def kernel(x_ref, w_ref, prm_ref, o_ref):
        # x_ref  : (cin, spad)      bf16  one flattened sample, zero strip >= pad*(w+1) per side
        # w_ref  : (k*k, cout, cin) bf16  tap t = kh*k + kw holds weight[:, :, kh, kw]
        # prm_ref: (cout, 3)        f32   [conv bias | GN gamma | GN beta]
        # o_ref  : (cout, hw)
        prm = prm_ref[...]
        bias, gamma, beta = prm[:, 0:1], prm[:, 1:2], prm[:, 2:3]

        # output column index (periodic in w) used to mask the left/right column wrap
        col = lax.broadcasted_iota(jnp.int32, (cout, hw), 1) % w

        # ---- conv: k*k accumulated MXU matmuls over lane-shifted views (f32 accumulate) ----
        acc = jnp.zeros((cout, hw), jnp.float32)
        for kw in range(k):
            part = jnp.zeros((cout, hw), jnp.float32)
            for kh in range(k):
                s = off - pad * (w + 1) + kh * w + kw        # static lane offset of this tap
                tap = x_ref[:, pl.ds(s, hw)]                 # (cin, hw) bf16
                part = part + jnp.dot(w_ref[kh * k + kw], tap,
                                      preferred_element_type=jnp.float32)
            # zero contributions whose source column fell outside [0, w)
            lo, hi = pad - kw, (w - 1) + pad - kw
            valid = None
            if lo > 0:
                valid = col >= lo
            if hi < w - 1:
                c = col <= hi
                valid = c if valid is None else jnp.logical_and(valid, c)
            if valid is not None:
                part = jnp.where(valid, part, 0.0)
            acc = acc + part
        y = acc + bias                                        # (cout, hw) f32

        # ---- GroupNorm (per sample, two-pass, f32, eps = 1e-5) ----
        ch_sum = jnp.sum(y, axis=1, keepdims=True)            # (cout, 1)
        if cpg == 1:
            mean = ch_sum * inv_n
        else:
            gsum = jnp.sum(ch_sum.reshape(ng, cpg), axis=1, keepdims=True)
            mean = jnp.broadcast_to(gsum * inv_n, (ng, cpg)).reshape(cout, 1)
        d = y - mean
        ch_var = jnp.sum(d * d, axis=1, keepdims=True)        # (cout, 1)
        if cpg == 1:
            var = ch_var * inv_n
        else:
            gvar = jnp.sum(ch_var.reshape(ng, cpg), axis=1, keepdims=True)
            var = jnp.broadcast_to(gvar * inv_n, (ng, cpg)).reshape(cout, 1)
        inv_std = lax.rsqrt(var + eps)
        yn = d * (inv_std * gamma) + beta

        # ---- ELU (alpha = 1); clamp so the unselected branch stays finite ----
        out = jnp.where(yn > 0, yn, jnp.exp(jnp.minimum(yn, 0.0)) - 1.0)
        o_ref[...] = out.astype(o_ref.dtype)

    return kernel


def conv2d_zero_pad_forward(x, params, *, kernel_size=3, out_dtype=None):
    """Pallas version of Conv2d_zero_pad.forward.  x: (B, C_in, H, W)."""
    b, cin, h, w = x.shape
    k = kernel_size
    assert k % 2 == 1, "odd kernel sizes only (module keeps the spatial size)"
    pad = k // 2
    weight = params["weight"]                    # (cout, cin, k, k)
    cout = weight.shape[0]
    ng = _num_groups(cout)
    hw = h * w
    out_dtype = x.dtype if out_dtype is None else out_dtype   # pass jnp.bfloat16 to halve writes

    # flattened-spatial zero strip; it also serves as the top/bottom padding rows
    off = pad * (w + 1)
    spad = _round_up(hw + 2 * off, 128)

    # ---- wrapper glue (single fused pass over x; ~1.1x activation bytes, not 9x) ----
    xflat = x.reshape(b, cin, hw).astype(jnp.bfloat16)
    xpad = jnp.pad(xflat, ((0, 0), (0, 0), (off, spad - hw - off)))      # (b, cin, spad)

    w_taps = jnp.transpose(weight, (2, 3, 0, 1)).reshape(k * k, cout, cin)
    w_taps = w_taps.astype(jnp.bfloat16)                                 # (k*k, cout, cin)
    prm = jnp.stack([params["bias"], params["gamma"], params["beta"]],
                    axis=1).astype(jnp.float32)                          # (cout, 3)

    # ---- VMEM budget / cost hints ----
    out_isize = jnp.dtype(out_dtype).itemsize
    block_bytes = (cin * spad * 2 + cout * hw * out_isize
                   + k * k * cout * cin * 2 + cout * 3 * 4
                   + 4 * cout * hw * 4)                                  # + f32 working set
    cost = pl.CostEstimate(
        flops=2 * b * cout * cin * k * k * hw,
        transcendentals=b * cout * hw,
        bytes_accessed=int(xpad.size * 2 + w_taps.size * 2 + prm.size * 4
                           + b * cout * hw * out_isize),
    )

    kernel = _make_kernel(cin, cout, h, w, k, ng, off)
    out = pl.pallas_call(
        kernel,
        out_shape=jax.ShapeDtypeStruct((b, cout, hw), out_dtype),
        grid=(b,),                                       # >= 2 steps: pipelining + megacore
        in_specs=[
            pl.BlockSpec((None, cin, spad), lambda i: (i, 0, 0)),   # one padded sample
            pl.BlockSpec((k * k, cout, cin), lambda i: (0, 0, 0)),  # tap weights (resident)
            pl.BlockSpec((cout, 3), lambda i: (0, 0)),              # packed bias/gamma/beta
        ],
        out_specs=pl.BlockSpec((None, cout, hw), lambda i: (i, 0, 0)),  # lane-dense store
        compiler_params=pltpu.CompilerParams(
            dimension_semantics=("parallel",),
            vmem_limit_bytes=_vmem_limit_bytes(block_bytes),
        ),
        cost_estimate=cost,
    )(xpad, w_taps, prm)

    return out.reshape(b, cout, h, w)


def reference_forward(x, params, *, kernel_size=3):
    """Pure-JAX reference mirroring the PyTorch module exactly (f32)."""
    k = kernel_size
    pad = k // 2
    weight, bias = params["weight"], params["bias"]
    gamma, beta = params["gamma"], params["beta"]
    cout = weight.shape[0]
    ng = _num_groups(cout)
    dn = ("NCHW", "OIHW", "NCHW")
    y = lax.conv_general_dilated(x, weight, (1, 1), ((pad, pad), (pad, pad)),
                                 dimension_numbers=dn,
                                 precision=lax.Precision.HIGHEST)
    y = y + bias[None, :, None, None]
    b = x.shape[0]
    yg = y.reshape(b, ng, -1)
    mean = yg.mean(axis=2, keepdims=True)
    var = ((yg - mean) ** 2).mean(axis=2, keepdims=True)
    yn = ((yg - mean) / jnp.sqrt(var + 1e-5)).reshape(y.shape)
    yn = yn * gamma[None, :, None, None] + beta[None, :, None, None]
    return jnp.where(yn > 0, yn, jnp.exp(jnp.minimum(yn, 0.0)) - 1.0)


if __name__ == "__main__":
    b, cin, h, w = 2, 4, 16, 16
    cout, ksz = 8, 3

    key = jax.random.PRNGKey(0)
    ks = jax.random.split(key, 5)
    params = {
        "weight": jax.random.normal(ks[0], (cout, cin, ksz, ksz), jnp.float32) * 0.1,
        "bias": jax.random.normal(ks[1], (cout,), jnp.float32) * 0.1,
        "gamma": 1.0 + 0.1 * jax.random.normal(ks[2], (cout,), jnp.float32),
        "beta": 0.1 * jax.random.normal(ks[3], (cout,), jnp.float32),
    }
    x = jax.random.normal(ks[4], (b, cin, h, w), jnp.float32)

    out = jax.block_until_ready(conv2d_zero_pad_forward(x, params, kernel_size=ksz))
    assert out.shape == (b, cout, h, w), out.shape

    ref = jax.block_until_ready(reference_forward(x, params, kernel_size=ksz))
    # bf16 MXU operands with f32 accumulation -> compare at a bf16-appropriate tolerance
    np.testing.assert_allclose(np.asarray(out), np.asarray(ref), rtol=3e-2, atol=3e-2)
    print("KERNEL_OK")
</pallas_src>

<mosaic_0001>
module attributes {stable_mosaic.version = 11 : i64} {
  func.func @kernel(%arg0: i32, %arg1: memref<1x4x384xbf16, #tpu.memory_space<vmem>>, %arg2: memref<9x8x4xbf16, #tpu.memory_space<vmem>>, %arg3: memref<8x3xf32, #tpu.memory_space<vmem>>, %arg4: memref<1x8x256xf32, #tpu.memory_space<vmem>>) attributes {dimension_semantics = [#tpu.dimension_semantics<parallel>], iteration_bounds = array<i64: 2>, scalar_prefetch = 0 : i64, scratch_operands = 0 : i64, tpu.core_type = #tpu.core_type<tc>, window_params = [{transform_indices = @transform_0, window_bounds = array<i64: 1, 4, 384>}, {pipeline_mode = #tpu.pipeline_mode<synchronous>, transform_indices = @transform_1, window_bounds = array<i64: 9, 8, 4>}, {pipeline_mode = #tpu.pipeline_mode<synchronous>, transform_indices = @transform_2, window_bounds = array<i64: 8, 3>}, {transform_indices = @transform_3, window_bounds = array<i64: 1, 8, 256>}]} {
    %c0 = arith.constant 0 : index
    %c0_0 = arith.constant 0 : index
    %0 = vector.load %arg3[%c0, %c0_0] : memref<8x3xf32, #tpu.memory_space<vmem>>, vector<8x3xf32>
    %1 = vector.extract_strided_slice %0 {offsets = [0, 0], sizes = [8, 1], strides = [1, 1]} : vector<8x3xf32> to vector<8x1xf32>
    %2 = vector.extract_strided_slice %0 {offsets = [0, 1], sizes = [8, 1], strides = [1, 1]} : vector<8x3xf32> to vector<8x1xf32>
    %3 = vector.extract_strided_slice %0 {offsets = [0, 2], sizes = [8, 1], strides = [1, 1]} : vector<8x3xf32> to vector<8x1xf32>
    %4 = tpu.iota {dimensions = array<i32: 1>} : vector<8x256xi32>
    %c16_i32 = arith.constant 16 : i32
    %c0_i32 = arith.constant 0 : i32
    %5 = arith.cmpi eq, %c16_i32, %c0_i32 : i32
    %c1_i32 = arith.constant 1 : i32
    %6 = arith.select %5, %c1_i32, %c16_i32 : i32
    %7 = vector.broadcast %6 : i32 to vector<8x256xi32>
    %8 = arith.remsi %4, %7 : vector<8x256xi32>
    %c0_i32_1 = arith.constant 0 : i32
    %9 = vector.broadcast %c0_i32_1 : i32 to vector<8x256xi32>
    %10 = arith.cmpi ne, %8, %9 : vector<8x256xi32>
    %c0_i32_2 = arith.constant 0 : i32
    %11 = vector.broadcast %c0_i32_2 : i32 to vector<8x256xi32>
    %12 = arith.cmpi slt, %8, %11 : vector<8x256xi32>
    %c0_i32_3 = arith.constant 0 : i32
    %13 = arith.cmpi slt, %6, %c0_i32_3 : i32
    %14 = vector.broadcast %13 : i1 to vector<8x256xi1>
    %15 = vector.broadcast %14 : vector<8x256xi1> to vector<8x256xi1>
    %16 = arith.xori %12, %15 : vector<8x256xi1>
    %17 = arith.andi %16, %10 : vector<8x256xi1>
    %18 = vector.broadcast %6 : i32 to vector<8x256xi32>
    %19 = arith.addi %8, %18 : vector<8x256xi32>
    %20 = arith.select %17, %19, %8 : vector<8x256xi1>, vector<8x256xi32>
    %cst = arith.constant 0.000000e+00 : f32
    %21 = vector.broadcast %cst : f32 to vector<8x256xf32>
    %cst_4 = arith.constant 0.000000e+00 : f32
    %22 = vector.broadcast %cst_4 : f32 to vector<8x256xf32>
    %c0_5 = arith.constant 0 : index
    %c0_6 = arith.constant 0 : index
    %c0_7 = arith.constant 0 : index
    %23 = vector.load %arg1[%c0_5, %c0_6, %c0_7] : memref<1x4x384xbf16, #tpu.memory_space<vmem>>, vector<1x4x256xbf16>
    %24 = vector.shape_cast %23 : vector<1x4x256xbf16> to vector<4x256xbf16>
    %c0_8 = arith.constant 0 : index
    %c0_9 = arith.constant 0 : index
    %c0_10 = arith.constant 0 : index
    %25 = vector.load %arg2[%c0_8, %c0_9, %c0_10] : memref<9x8x4xbf16, #tpu.memory_space<vmem>>, vector<1x8x4xbf16>
    %26 = vector.shape_cast %25 : vector<1x8x4xbf16> to vector<8x4xbf16>
    %cst_11 = arith.constant dense<0.000000e+00> : vector<8x256xf32>
    %27 = tpu.matmul %26, %24, %cst_11 {dimension_numbers = #tpu.dot_dimension_numbers<[1], [0], [0], [1], [0, 0, 1, 1], [], []>} : vector<8x4xbf16>, vector<4x256xbf16>, vector<8x256xf32> -> vector<8x256xf32>
    %28 = arith.addf %22, %27 : vector<8x256xf32>
    %c0_12 = arith.constant 0 : index
    %c0_13 = arith.constant 0 : index
    %c16 = arith.constant 16 : index
    %29 = vector.load %arg1[%c0_12, %c0_13, %c16] : memref<1x4x384xbf16, #tpu.memory_space<vmem>>, vector<1x4x256xbf16>
    %30 = vector.shape_cast %29 : vector<1x4x256xbf16> to vector<4x256xbf16>
    %c3 = arith.constant 3 : index
    %c0_14 = arith.constant 0 : index
    %c0_15 = arith.constant 0 : index
    %31 = vector.load %arg2[%c3, %c0_14, %c0_15] : memref<9x8x4xbf16, #tpu.memory_space<vmem>>, vector<1x8x4xbf16>
    %32 = vector.shape_cast %31 : vector<1x8x4xbf16> to vector<8x4xbf16>
    %cst_16 = arith.constant dense<0.000000e+00> : vector<8x256xf32>
    %33 = tpu.matmul %32, %30, %cst_16 {dimension_numbers = #tpu.dot_dimension_numbers<[1], [0], [0], [1], [0, 0, 1, 1], [], []>} : vector<8x4xbf16>, vector<4x256xbf16>, vector<8x256xf32> -> vector<8x256xf32>
    %34 = arith.addf %28, %33 : vector<8x256xf32>
    %c0_17 = arith.constant 0 : index
    %c0_18 = arith.constant 0 : index
    %c32 = arith.constant 32 : index
    %35 = vector.load %arg1[%c0_17, %c0_18, %c32] : memref<1x4x384xbf16, #tpu.memory_space<vmem>>, vector<1x4x256xbf16>
    %36 = vector.shape_cast %35 : vector<1x4x256xbf16> to vector<4x256xbf16>
    %c6 = arith.constant 6 : index
    %c0_19 = arith.constant 0 : index
    %c0_20 = arith.constant 0 : index
    %37 = vector.load %arg2[%c6, %c0_19, %c0_20] : memref<9x8x4xbf16, #tpu.memory_space<vmem>>, vector<1x8x4xbf16>
    %38 = vector.shape_cast %37 : vector<1x8x4xbf16> to vector<8x4xbf16>
    %cst_21 = arith.constant dense<0.000000e+00> : vector<8x256xf32>
    %39 = tpu.matmul %38, %36, %cst_21 {dimension_numbers = #tpu.dot_dimension_numbers<[1], [0], [0], [1], [0, 0, 1, 1], [], []>} : vector<8x4xbf16>, vector<4x256xbf16>, vector<8x256xf32> -> vector<8x256xf32>
    %40 = arith.addf %34, %39 : vector<8x256xf32>
    %c1_i32_22 = arith.constant 1 : i32
    %41 = vector.broadcast %c1_i32_22 : i32 to vector<8x256xi32>
    %42 = arith.cmpi sge, %20, %41 : vector<8x256xi32>
    %cst_23 = arith.constant 0.000000e+00 : f32
    %43 = vector.broadcast %cst_23 : f32 to vector<8x256xf32>
    %44 = arith.select %42, %40, %43 : vector<8x256xi1>, vector<8x256xf32>
    %45 = arith.addf %21, %44 : vector<8x256xf32>
    %cst_24 = arith.constant 0.000000e+00 : f32
    %46 = vector.broadcast %cst_24 : f32 to vector<8x256xf32>
    %c0_25 = arith.constant 0 : index
    %c0_26 = arith.constant 0 : index
    %c1 = arith.constant 1 : index
    %47 = vector.load %arg1[%c0_25, %c0_26, %c1] : memref<1x4x384xbf16, #tpu.memory_space<vmem>>, vector<1x4x256xbf16>
    %48 = vector.shape_cast %47 : vector<1x4x256xbf16> to vector<4x256xbf16>
    %c1_27 = arith.constant 1 : index
    %c0_28 = arith.constant 0 : index
    %c0_29 = arith.constant 0 : index
    %49 = vector.load %arg2[%c1_27, %c0_28, %c0_29] : memref<9x8x4xbf16, #tpu.memory_space<vmem>>, vector<1x8x4xbf16>
    %50 = vector.shape_cast %49 : vector<1x8x4xbf16> to vector<8x4xbf16>
    %cst_30 = arith.constant dense<0.000000e+00> : vector<8x256xf32>
    %51 = tpu.matmul %50, %48, %cst_30 {dimension_numbers = #tpu.dot_dimension_numbers<[1], [0], [0], [1], [0, 0, 1, 1], [], []>} : vector<8x4xbf16>, vector<4x256xbf16>, vector<8x256xf32> -> vector<8x256xf32>
    %52 = arith.addf %46, %51 : vector<8x256xf32>
    %c0_31 = arith.constant 0 : index
    %c0_32 = arith.constant 0 : index
    %c17 = arith.constant 17 : index
    %53 = vector.load %arg1[%c0_31, %c0_32, %c17] : memref<1x4x384xbf16, #tpu.memory_space<vmem>>, vector<1x4x256xbf16>
    %54 = vector.shape_cast %53 : vector<1x4x256xbf16> to vector<4x256xbf16>
    %c4 = arith.constant 4 : index
    %c0_33 = arith.constant 0 : index
    %c0_34 = arith.constant 0 : index
    %55 = vector.load %arg2[%c4, %c0_33, %c0_34] : memref<9x8x4xbf16, #tpu.memory_space<vmem>>, vector<1x8x4xbf16>
    %56 = vector.shape_cast %55 : vector<1x8x4xbf16> to vector<8x4xbf16>
    %cst_35 = arith.constant dense<0.000000e+00> : vector<8x256xf32>
    %57 = tpu.matmul %56, %54, %cst_35 {dimension_numbers = #tpu.dot_dimension_numbers<[1], [0], [0], [1], [0, 0, 1, 1], [], []>} : vector<8x4xbf16>, vector<4x256xbf16>, vector<8x256xf32> -> vector<8x256xf32>
    %58 = arith.addf %52, %57 : vector<8x256xf32>
    %c0_36 = arith.constant 0 : index
    %c0_37 = arith.constant 0 : index
    %c33 = arith.constant 33 : index
    %59 = vector.load %arg1[%c0_36, %c0_37, %c33] : memref<1x4x384xbf16, #tpu.memory_space<vmem>>, vector<1x4x256xbf16>
    %60 = vector.shape_cast %59 : vector<1x4x256xbf16> to vector<4x256xbf16>
    %c7 = arith.constant 7 : index
    %c0_38 = arith.constant 0 : index
    %c0_39 = arith.constant 0 : index
    %61 = vector.load %arg2[%c7, %c0_38, %c0_39] : memref<9x8x4xbf16, #tpu.memory_space<vmem>>, vector<1x8x4xbf16>
    %62 = vector.shape_cast %61 : vector<1x8x4xbf16> to vector<8x4xbf16>
    %cst_40 = arith.constant dense<0.000000e+00> : vector<8x256xf32>
    %63 = tpu.matmul %62, %60, %cst_40 {dimension_numbers = #tpu.dot_dimension_numbers<[1], [0], [0], [1], [0, 0, 1, 1], [], []>} : vector<8x4xbf16>, vector<4x256xbf16>, vector<8x256xf32> -> vector<8x256xf32>
    %64 = arith.addf %58, %63 : vector<8x256xf32>
    %65 = arith.addf %45, %64 : vector<8x256xf32>
    %cst_41 = arith.constant 0.000000e+00 : f32
    %66 = vector.broadcast %cst_41 : f32 to vector<8x256xf32>
    %c0_42 = arith.constant 0 : index
    %c0_43 = arith.constant 0 : index
    %c2 = arith.constant 2 : index
    %67 = vector.load %arg1[%c0_42, %c0_43, %c2] : memref<1x4x384xbf16, #tpu.memory_space<vmem>>, vector<1x4x256xbf16>
    %68 = vector.shape_cast %67 : vector<1x4x256xbf16> to vector<4x256xbf16>
    %c2_44 = arith.constant 2 : index
    %c0_45 = arith.constant 0 : index
    %c0_46 = arith.constant 0 : index
    %69 = vector.load %arg2[%c2_44, %c0_45, %c0_46] : memref<9x8x4xbf16, #tpu.memory_space<vmem>>, vector<1x8x4xbf16>
    %70 = vector.shape_cast %69 : vector<1x8x4xbf16> to vector<8x4xbf16>
    %cst_47 = arith.constant dense<0.000000e+00> : vector<8x256xf32>
    %71 = tpu.matmul %70, %68, %cst_47 {dimension_numbers = #tpu.dot_dimension_numbers<[1], [0], [0], [1], [0, 0, 1, 1], [], []>} : vector<8x4xbf16>, vector<4x256xbf16>, vector<8x256xf32> -> vector<8x256xf32>
    %72 = arith.addf %66, %71 : vector<8x256xf32>
    %c0_48 = arith.constant 0 : index
    %c0_49 = arith.constant 0 : index
    %c18 = arith.constant 18 : index
    %73 = vector.load %arg1[%c0_48, %c0_49, %c18] : memref<1x4x384xbf16, #tpu.memory_space<vmem>>, vector<1x4x256xbf16>
    %74 = vector.shape_cast %73 : vector<1x4x256xbf16> to vector<4x256xbf16>
    %c5 = arith.constant 5 : index
    %c0_50 = arith.constant 0 : index
    %c0_51 = arith.constant 0 : index
    %75 = vector.load %arg2[%c5, %c0_50, %c0_51] : memref<9x8x4xbf16, #tpu.memory_space<vmem>>, vector<1x8x4xbf16>
    %76 = vector.shape_cast %75 : vector<1x8x4xbf16> to vector<8x4xbf16>
    %cst_52 = arith.constant dense<0.000000e+00> : vector<8x256xf32>
    %77 = tpu.matmul %76, %74, %cst_52 {dimension_numbers = #tpu.dot_dimension_numbers<[1], [0], [0], [1], [0, 0, 1, 1], [], []>} : vector<8x4xbf16>, vector<4x256xbf16>, vector<8x256xf32> -> vector<8x256xf32>
    %78 = arith.addf %72, %77 : vector<8x256xf32>
    %c0_53 = arith.constant 0 : index
    %c0_54 = arith.constant 0 : index
    %c34 = arith.constant 34 : index
    %79 = vector.load %arg1[%c0_53, %c0_54, %c34] : memref<1x4x384xbf16, #tpu.memory_space<vmem>>, vector<1x4x256xbf16>
    %80 = vector.shape_cast %79 : vector<1x4x256xbf16> to vector<4x256xbf16>
    %c8 = arith.constant 8 : index
    %c0_55 = arith.constant 0 : index
    %c0_56 = arith.constant 0 : index
    %81 = vector.load %arg2[%c8, %c0_55, %c0_56] : memref<9x8x4xbf16, #tpu.memory_space<vmem>>, vector<1x8x4xbf16>
    %82 = vector.shape_cast %81 : vector<1x8x4xbf16> to vector<8x4xbf16>
    %cst_57 = arith.constant dense<0.000000e+00> : vector<8x256xf32>
    %83 = tpu.matmul %82, %80, %cst_57 {dimension_numbers = #tpu.dot_dimension_numbers<[1], [0], [0], [1], [0, 0, 1, 1], [], []>} : vector<8x4xbf16>, vector<4x256xbf16>, vector<8x256xf32> -> vector<8x256xf32>
    %84 = arith.addf %78, %83 : vector<8x256xf32>
    %c14_i32 = arith.constant 14 : i32
    %85 = vector.broadcast %c14_i32 : i32 to vector<8x256xi32>
    %86 = arith.cmpi sle, %20, %85 : vector<8x256xi32>
    %cst_58 = arith.constant 0.000000e+00 : f32
    %87 = vector.broadcast %cst_58 : f32 to vector<8x256xf32>
    %88 = arith.select %86, %84, %87 : vector<8x256xi1>, vector<8x256xf32>
    %89 = arith.addf %65, %88 : vector<8x256xf32>
    %90 = vector.broadcast %1 : vector<8x1xf32> to vector<8x256xf32>
    %91 = arith.addf %89, %90 : vector<8x256xf32>
    %cst_59 = arith.constant dense<0.000000e+00> : vector<8xf32>
    %92 = vector.multi_reduction <add>, %91, %cst_59 [1] : vector<8x256xf32> to vector<8xf32>
    %93 = vector.shape_cast %92 : vector<8xf32> to vector<8x1xf32>
    %cst_60 = arith.constant 3.906250e-03 : f32
    %94 = vector.broadcast %cst_60 : f32 to vector<8x1xf32>
    %95 = arith.mulf %93, %94 : vector<8x1xf32>
    %96 = vector.broadcast %95 : vector<8x1xf32> to vector<8x256xf32>
    %97 = arith.subf %91, %96 : vector<8x256xf32>
    %98 = arith.mulf %97, %97 : vector<8x256xf32>
    %cst_61 = arith.constant dense<0.000000e+00> : vector<8xf32>
    %99 = vector.multi_reduction <add>, %98, %cst_61 [1] : vector<8x256xf32> to vector<8xf32>
    %100 = vector.shape_cast %99 : vector<8xf32> to vector<8x1xf32>
    %cst_62 = arith.constant 3.906250e-03 : f32
    %101 = vector.broadcast %cst_62 : f32 to vector<8x1xf32>
    %102 = arith.mulf %100, %101 : vector<8x1xf32>
    %cst_63 = arith.constant 9.99999974E-6 : f32
    %103 = vector.broadcast %cst_63 : f32 to vector<8x1xf32>
    %104 = arith.addf %102, %103 : vector<8x1xf32>
    %105 = math.rsqrt %104 : vector<8x1xf32>
    %106 = arith.mulf %105, %2 : vector<8x1xf32>
    %107 = vector.broadcast %106 : vector<8x1xf32> to vector<8x256xf32>
    %108 = arith.mulf %97, %107 : vector<8x256xf32>
    %109 = vector.broadcast %3 : vector<8x1xf32> to vector<8x256xf32>
    %110 = arith.addf %108, %109 : vector<8x256xf32>
    %cst_64 = arith.constant 0.000000e+00 : f32
    %111 = vector.broadcast %cst_64 : f32 to vector<8x256xf32>
    %112 = arith.cmpf ogt, %110, %111 : vector<8x256xf32>
    %cst_65 = arith.constant 0.000000e+00 : f32
    %113 = vector.broadcast %cst_65 : f32 to vector<8x256xf32>
    %114 = arith.minimumf %110, %113 : vector<8x256xf32>
    %115 = math.exp %114 : vector<8x256xf32>
    %cst_66 = arith.constant 1.000000e+00 : f32
    %116 = vector.broadcast %cst_66 : f32 to vector<8x256xf32>
    %117 = arith.subf %115, %116 : vector<8x256xf32>
    %118 = arith.select %112, %110, %117 : vector<8x256xi1>, vector<8x256xf32>
    %c0_67 = arith.constant 0 : index
    %c0_68 = arith.constant 0 : index
    %c0_69 = arith.constant 0 : index
    %119 = vector.load %arg4[%c0_67, %c0_68, %c0_69] : memref<1x8x256xf32, #tpu.memory_space<vmem>>, vector<1x8x256xf32>
    %120 = vector.shape_cast %119 : vector<1x8x256xf32> to vector<8x256xf32>
    %121 = vector.shape_cast %118 : vector<8x256xf32> to vector<1x8x256xf32>
    tpu.vector_store %arg4[%c0_67, %c0_68, %c0_69], %121 {strides = array<i32>} : memref<1x8x256xf32, #tpu.memory_space<vmem>>, vector<1x8x256xf32>,
    return
  }
  func.func @transform_0(%arg0: i32) -> (i32, i32, i32) {
    %c0_i32 = arith.constant 0 : i32
    %c0_i32_0 = arith.constant 0 : i32
    %c0_i32_1 = arith.constant 0 : i32
    return %arg0, %c0_i32, %c0_i32_0 : i32, i32, i32
  }
  func.func @transform_1(%arg0: i32) -> (i32, i32, i32) {
    %c0_i32 = arith.constant 0 : i32
    %c0_i32_0 = arith.constant 0 : i32
    %c0_i32_1 = arith.constant 0 : i32
    %c0_i32_2 = arith.constant 0 : i32
    return %c0_i32, %c0_i32_0, %c0_i32_1 : i32, i32, i32
  }
  func.func @transform_2(%arg0: i32) -> (i32, i32) {
    %c0_i32 = arith.constant 0 : i32
    %c0_i32_0 = arith.constant 0 : i32
    %c0_i32_1 = arith.constant 0 : i32
    return %c0_i32, %c0_i32_0 : i32, i32
  }
  func.func @transform_3(%arg0: i32) -> (i32, i32, i32) {
    %c0_i32 = arith.constant 0 : i32
    %c0_i32_0 = arith.constant 0 : i32
    %c0_i32_1 = arith.constant 0 : i32
    return %arg0, %c0_i32, %c0_i32_0 : i32, i32, i32
  }
}

</mosaic_0001>

<llo_original>
// kernel: tpu_custom_call.1
$region0: #{tpu_custom_call.1}
  #allocation0 [shape = 'u32[]', space=smem, size = 0x4, offset = 0x4, fixed_abs, tag = 'smem constant byte address 0x4 - core index']
  #allocation1 [shape = 'u32[72,128]{1,0:T(1,128)}', space=vmem, size = 0x9000, scoped, tag = 'internal scratch']
  %s0 = inlined_call_operand.vmem [shape: bf16[2,4,384], index: 0, kind: input, shape index: {}]
  %s1 = inlined_call_operand.vmem [shape: bf16[9,8,4], index: 1, kind: input, shape index: {}]
  %s2 = inlined_call_operand.vmem [shape: f32[8,3], index: 2, kind: input, shape index: {}]
  %s3 = inlined_call_operand.hbm [shape: f32[2,8,256], index: 3, kind: output, shape index: {}]
  %s4 = sld [smem:[#allocation0]]
  $region45: #{tpu_custom_call.1} parent=0
    _
  %s6 = ssub.s32 1, %s4
  %s7 = scalar_select 0, %s6, %s4
  $region1: #{tpu_custom_call.1} parent=0
    #allocation2 [shape = 'u8[16384]{0}', space=vmem, size = 0x4000, scoped, tag = 'output window, operand 0']
    #allocation3 [shape = 's32[2]{0}', space=sflag, size = 0x8, scoped, tag = 'scoped memory for tpu_custom_call.1']
    %8 = vsyncpa [#allocation3], 0
    %s9 = scalar_lea.sflag [#allocation3], 1
    %10 = vsyncpa %s9, 0
    loop: start=0, step=1, limit=4
    $region2: #{tpu_custom_call.1} parent=1 // loop_pre_header
      _
    $region3: #{tpu_custom_call.1} parent=1 // loop_header
      %s12 = sphi 0, %s16
      %p13 = scmp.ge.s32.totalorder %s12, 4
      %s22 = sphi 0, %s24
      %s25 = sphi 0, %s22
      %s26 = sphi 0, %s25
      %s42 = sphi 0, %s26
      %s46 = sphi 0, %s46
      %s48 = sphi 0, %s46
      %s49 = sphi 0, %s48
      %s63 = sphi 0, %s49
      %s67 = sphi 0, %s67
      %s69 = sphi 0, %s67
      %s70 = sphi 0, %s69
      %s84 = sphi 0, %s70
      %s90 = sphi 0, %s92
      %s93 = sphi 0, %s90
      %s94 = sphi 0, %s93
      %s110 = sphi 0, %s94
    $region4: #{tpu_custom_call.1} parent=1 // loop_header_branch
      %15 = sbr.rel (%p13) target = $region8
    $region5: #{tpu_custom_call.1} parent=1 // loop_body
      %s17 = ssub.s32 %s12, 1
      %s18 = ssub.s32 %s12, 2
      %s19 = sadd.s32 %s12, 1
      %s20 = ssub.s32 %s12, %s19
      %p21 = scmp.eq.s32.totalorder %s20, 0
      %s23 = sadd.s32 %s22, 1
      %s24 = scalar_select %p21, %s22, %s23
      %p27 = pneg %p21
      %p28 = scmp.eq.s32.totalorder %s12, 1
      %p29 = por %p27, %p28
      %p30 = scmp.ne.s32.totalorder %s22, %s25
      %p31 = scmp.eq.s32.totalorder %s12, 0
      %p32 = por %p30, %p31
      %p33 = scmp.ne.s32.totalorder %s22, %s25
      %p34 = scmp.eq.s32.totalorder %s17, 1
      %p35 = por %p33, %p34
      %p36 = scmp.ne.s32.totalorder %s25, %s26
      %p37 = scmp.eq.s32.totalorder %s17, 0
      %p38 = por %p36, %p37
      %p39 = scmp.ne.s32.totalorder %s25, %s26
      %p40 = scmp.eq.s32.totalorder %s18, 1
      %p41 = por %p39, %p40
      %p43 = scmp.ne.s32.totalorder %s26, %s42
      %p44 = scmp.eq.s32.totalorder %s18, 0
      %p45 = por %p43, %p44
      %s47 = sadd.s32 %s46, 1
      %p50 = scmp.eq.s32.totalorder %s12, 1
      %p51 = scmp.ne.s32.totalorder %s46, %s48
      %p52 = scmp.eq.s32.totalorder %s12, 0
      %p53 = por %p51, %p52
      %p54 = scmp.ne.s32.totalorder %s46, %s48
      %p55 = scmp.eq.s32.totalorder %s17, 1
      %p56 = por %p54, %p55
      %p57 = scmp.ne.s32.totalorder %s48, %s49
      %p58 = scmp.eq.s32.totalorder %s17, 0
      %p59 = por %p57, %p58
      %p60 = scmp.ne.s32.totalorder %s48, %s49
      %p61 = scmp.eq.s32.totalorder %s18, 1
      %p62 = por %p60, %p61
      %p64 = scmp.ne.s32.totalorder %s49, %s63
      %p65 = scmp.eq.s32.totalorder %s18, 0
      %p66 = por %p64, %p65
      %s68 = sadd.s32 %s67, 1
      %p71 = scmp.eq.s32.totalorder %s12, 1
      %p72 = scmp.ne.s32.totalorder %s67, %s69
      %p73 = scmp.eq.s32.totalorder %s12, 0
      %p74 = por %p72, %p73
      %p75 = scmp.ne.s32.totalorder %s67, %s69
      %p76 = scmp.eq.s32.totalorder %s17, 1
      %p77 = por %p75, %p76
      %p78 = scmp.ne.s32.totalorder %s69, %s70
      %p79 = scmp.eq.s32.totalorder %s17, 0
      %p80 = por %p78, %p79
      %p81 = scmp.ne.s32.totalorder %s69, %s70
      %p82 = scmp.eq.s32.totalorder %s18, 1
      %p83 = por %p81, %p82
      %p85 = scmp.ne.s32.totalorder %s70, %s84
      %p86 = scmp.eq.s32.totalorder %s18, 0
      %p87 = por %p85, %p86
      %s88 = ssub.s32 %s12, %s19
      %p89 = scmp.eq.s32.totalorder %s88, 0
      %s91 = sadd.s32 %s90, 1
      %s92 = scalar_select %p89, %s90, %s91
      %p95 = pneg %p89
      %p96 = scmp.eq.s32.totalorder %s12, 1
      %p97 = por %p95, %p96
      %p98 = scmp.ne.s32.totalorder %s90, %s93
      %p99 = scmp.eq.s32.totalorder %s12, 0
      %p100 = por %p98, %p99
      %p101 = scmp.ne.s32.totalorder %s90, %s93
      %p102 = scmp.eq.s32.totalorder %s17, 1
      %p103 = por %p101, %p102
      %p104 = scmp.ne.s32.totalorder %s93, %s94
      %p105 = scmp.eq.s32.totalorder %s17, 0
      %p106 = por %p104, %p105
      %p107 = scmp.ne.s32.totalorder %s93, %s94
      %p108 = scmp.eq.s32.totalorder %s18, 1
      %p109 = por %p107, %p108
      %p111 = scmp.ne.s32.totalorder %s94, %s110
      %p112 = scmp.eq.s32.totalorder %s18, 0
      %p113 = por %p111, %p112
      %p114 = scmp.le.s32.totalorder 1, %s12
      %p115 = scmp.lt.s32.totalorder %s12, 3
      %p116 = pnand %p114, %p115
      %p117 = pneg %p116
      // Predicated region
      $region9: #{tpu_custom_call.1} parent=5 // pred_check
        _
      $region10: #{tpu_custom_call.1} parent=5 // pred_check_branch
        %119 = sbr.rel (%p116) target = $region12
      $region11: #{tpu_custom_call.1} parent=5 // pred_region
        %s120 = ssub.s32 %s12, 1
        // Predicated region
        $region13: #{tpu_custom_call.1} parent=11 // pred_check
          %p121 = pneg %p59
        $region14: #{tpu_custom_call.1} parent=11 // pred_check_branch
          %123 = sbr.rel (%p121) target = $region16
        $region15: #{tpu_custom_call.1} parent=11 // pred_region
          _
        $region16: #{tpu_custom_call.1} parent=11 // pred_fallthru
          _
        // Predicated region
        $region17: #{tpu_custom_call.1} parent=11 // pred_check
          %p124 = pneg %p80
        $region18: #{tpu_custom_call.1} parent=11 // pred_check_branch
          %126 = sbr.rel (%p124) target = $region20
        $region19: #{tpu_custom_call.1} parent=11 // pred_region
          _
        $region20: #{tpu_custom_call.1} parent=11 // pred_fallthru
          _
      $region12: #{tpu_custom_call.1} parent=5 // pred_fallthru
        _
      %p127 = scmp.lt.s32.totalorder %s12, 2
      // Predicated region
      $region21: #{tpu_custom_call.1} parent=5 // pred_check
        %p128 = pneg %p127
      $region22: #{tpu_custom_call.1} parent=5 // pred_check_branch
        %130 = sbr.rel (%p128) target = $region24
      $region23: #{tpu_custom_call.1} parent=5 // pred_region
        // Predicated region
        $region25: #{tpu_custom_call.1} parent=23 // pred_check
          %p131 = pneg %p32
        $region26: #{tpu_custom_call.1} parent=23 // pred_check_branch
          %133 = sbr.rel (%p131) target = $region28
        $region27: #{tpu_custom_call.1} parent=23 // pred_region
          %p134 = scmp.lt.s32.totalorder %s12, 1
          %s135 = scalar_select %p134, %s12, 1
          %s136 = smul.addr %s135, 3
          %s137 = smul.addr %s136, 2
          %s138 = scalar_lea.vmem %s0, %s137
        $region28: #{tpu_custom_call.1} parent=23 // pred_fallthru
          _
      $region24: #{tpu_custom_call.1} parent=5 // pred_fallthru
        _
      %p139 = scmp.le.s32.totalorder 1, %s12
      %p140 = scmp.lt.s32.totalorder %s12, 3
      %p141 = pnand %p139, %p140
      %p142 = pneg %p141
      // Predicated region
      $region29: #{tpu_custom_call.1} parent=5 // pred_check
        _
      $region30: #{tpu_custom_call.1} parent=5 // pred_check_branch
        %144 = sbr.rel (%p141) target = $region32
      $region31: #{tpu_custom_call.1} parent=5 // pred_region
        %s145 = ssub.s32 %s12, 1
        %p146 = scmp.lt.s32.totalorder %s17, 1
        %s147 = scalar_select %p146, %s17, 1
        %s148 = smul.addr %s147, 3
        %s149 = smul.addr %s148, 2
        %s150 = scalar_lea.vmem %s0, %s149
        %p151 = pneg %p38
        %p152 = pneg %p35
        %p153 = pneg %p59
        %p154 = pneg %p56
        %p155 = pneg %p80
        %p156 = pneg %p77
        %p157 = pneg %p106
        %p158 = pneg %p103
        %s159 = sand.u32 %s93, 1
        %s160 = scalar_lea.sflag [#allocation3], %s159
        %s161 = sand.u32 %s93, 1
        %s162 = smul.addr %s161, 16
        %s163 = scalar_lea.vmem [#allocation2], %s162
        %p164 = scmp.lt.s32.totalorder %s17, 1
        %s165 = scalar_select %p164, %s17, 1
        %s166 = smul.addr %s165, 3
        %s167 = smul.addr %s166, 2
        %s168 = scalar_lea.vmem %s0, %s167
        %v170 = vld [vmem:[%s2] sm:$0xff]
        %v171 = vlaneseq
        %v172 = vand.u32 %v171, 127
        %v173 = vadd.s32 %v172, 128
        %vm174 = vcmp.lt.s32.totalorder %v172, 0
        %v175 = vsub.s32 0, %v172
        %v176 = vsel %vm174, %v175, %v172
        %v177 = vshrl.u32 %v176, 4
        %v178 = vand.u32 %v176, 15
        %v179 = vsub.s32 0, %v178
        %v180 = vsel %vm174, %v179, %v178
        %vm181 = vcmp.lt.s32.totalorder %v173, 0
        %v182 = vsub.s32 0, %v173
        %v183 = vsel %vm181, %v182, %v173
        %v184 = vshrl.u32 %v183, 4
        %v185 = vand.u32 %v183, 15
        %v186 = vsub.s32 0, %v185
        %v187 = vsel %vm181, %v186, %v185
        %vm188 = vcmp.ne.s32.totalorder %v180, 0
        %vm189 = vcmp.ne.s32.totalorder %v187, 0
        %vm190 = vcmp.lt.s32.totalorder %v180, 0
        %vm191 = vcmp.lt.s32.totalorder %v187, 0
        %vm192 = vmand %vm190, %vm188
        %vm193 = vmand %vm191, %vm189
        %v194 = vadd.s32 %v180, 16
        %v195 = vadd.s32 %v187, 16
        %v196 = vsel %vm192, %v194, %v180
        %v197 = vsel %vm193, %v195, %v187
        %v198 = vld [vmem:[%s168] sm:$0xf]
        %v199 = vld [vmem:[%s1] sm:$0xf]
        %v200 = vld [vmem:[%s168] sm:$0x3f]
        %s201 = scalar_lea.vmem %s1, 12
        %v202 = vld [vmem:[%s201] sm:$0xf]
        %204 = vst [vmem:[#allocation1] ss:$4 sm:$0xff] %v200
        %v205 = vld.sshfl [vmem:[#allocation1] sm:$0xff pattern:$0x73625140]
        %v207 = vld.sshfl [vmem:[#allocation1 + $0x8] sm:$0xff pattern:$0x73625140]
        %v209 = vld.sshfl [vmem:[#allocation1 + $0x10] sm:$0xff pattern:$0x73625140]
        %211 = vrot.lane.b32.xlu0 %v205, 112
        %v212 = vpop.permute.xlu0 %211
        %213 = vrot.lane.b32.xlu0 %v207, 112
        %v214 = vpop.permute.xlu0 %213
        %215 = vrot.lane.b32.xlu0 %v209, 112
        %v216 = vpop.permute.xlu0 %215
        %vm217 = vcmask 916480
        %v218 = vsel %vm217, %v212, %v214
        %v219 = vsel %vm217, %v214, %v216
        %vm220 = vcmask 31744
        %v222 = vsel %vm220, %v202, 0
        %vm224 = vcmask 1041408
        %v226 = vsel %vm224, %v218, 0
        %v229 = vsel %vm224, %v219, 0
        %231 = vmatpush.bf16.msra.mxu0 0
        %232 = vmatpush.bf16.msra.mxu0 0
        %233 = vmatpush.bf16.msra.mxu0 0
        %234 = vmatpush.bf16.msra.mxu0 0
        %235 = vmatpush.bf16.msra.mxu0 0
        %236 = vmatpush.bf16.msra.mxu0 0
        %237 = vmatpush.bf16.msra.mxu0 0
        %238 = vmatpush.bf16.msra.mxu0 %v226
        %239 = vmatmul.bf16.gmra.mxu0 %v222
        %v240 = vpop.f32.mrf.mxu0
        %v241 = vadd.f32 0.0, %v240
        %v242 = vpop.f32.mrf.mxu0
        %243 = vdwg.mxu0
        %244 = vmatpush.bf16.msra.mxu0 0
        %245 = vmatpush.bf16.msra.mxu0 0
        %246 = vmatpush.bf16.msra.mxu0 0
        %247 = vmatpush.bf16.msra.mxu0 0
        %248 = vmatpush.bf16.msra.mxu0 0
        %249 = vmatpush.bf16.msra.mxu0 0
        %250 = vmatpush.bf16.msra.mxu0 0
        %251 = vmatpush.bf16.msra.mxu0 %v229
        %252 = vmatmul.bf16.gmra.mxu0 %v222
        %v253 = vpop.f32.mrf.mxu0
        %v254 = vadd.f32 0.0, %v253
        %v255 = vpop.f32.mrf.mxu0
        %256 = vdwg.mxu0
        %258 = vst [vmem:[#allocation1] ss:$4 sm:$0xff] %v198
        %v259 = vld.sshfl [vmem:[#allocation1] sm:$0xff pattern:$0x73625140]
        %v260 = vld.sshfl [vmem:[#allocation1 + $0x8] sm:$0xff pattern:$0x73625140]
        %v262 = vsel %vm220, %v199, 0
        %v264 = vsel %vm224, %v259, 0
        %v266 = vsel %vm224, %v260, 0
        %268 = vmatpush.bf16.msra.mxu0 0
        %269 = vmatpush.bf16.msra.mxu0 0
        %270 = vmatpush.bf16.msra.mxu0 0
        %271 = vmatpush.bf16.msra.mxu0 0
        %272 = vmatpush.bf16.msra.mxu0 0
        %273 = vmatpush.bf16.msra.mxu0 0
        %274 = vmatpush.bf16.msra.mxu0 0
        %275 = vmatpush.bf16.msra.mxu0 %v264
        %276 = vmatmul.bf16.gmra.mxu0 %v262
        %v277 = vpop.f32.mrf.mxu0
        %v278 = vadd.f32 %v241, %v277
        %v279 = vpop.f32.mrf.mxu0
        %280 = vdwg.mxu0
        %281 = vmatpush.bf16.msra.mxu0 0
        %282 = vmatpush.bf16.msra.mxu0 0
        %283 = vmatpush.bf16.msra.mxu0 0
        %284 = vmatpush.bf16.msra.mxu0 0
        %285 = vmatpush.bf16.msra.mxu0 0
        %286 = vmatpush.bf16.msra.mxu0 0
        %287 = vmatpush.bf16.msra.mxu0 0
        %288 = vmatpush.bf16.msra.mxu0 %v266
        %289 = vmatmul.bf16.gmra.mxu0 %v262
        %v290 = vpop.f32.mrf.mxu0
        %v291 = vadd.f32 %v254, %v290
        %v292 = vpop.f32.mrf.mxu0
        %293 = vdwg.mxu0
        %v294 = vld [vmem:[%s168] sm:$0x3f]
        %s295 = scalar_lea.vmem %s1, 24
        %v296 = vld [vmem:[%s295] sm:$0xf]
        %298 = vst [vmem:[#allocation1] ss:$4 sm:$0xff] %v294
        %v299 = vld.sshfl [vmem:[#allocation1] sm:$0xff pattern:$0x73625140]
        %v301 = vld.sshfl [vmem:[#allocation1 + $0x8] sm:$0xff pattern:$0x73625140]
        %v303 = vld.sshfl [vmem:[#allocation1 + $0x10] sm:$0xff pattern:$0x73625140]
        %305 = vrot.lane.b32.xlu0 %v299, 96
        %v306 = vpop.permute.xlu0 %305
        %307 = vrot.lane.b32.xlu0 %v301, 96
        %v308 = vpop.permute.xlu0 %307
        %309 = vrot.lane.b32.xlu0 %v303, 96
        %v310 = vpop.permute.xlu0 %309
        %vm311 = vcmask 785408
        %v312 = vsel %vm311, %v306, %v308
        %v313 = vsel %vm311, %v308, %v310
        %v315 = vsel %vm220, %v296, 0
        %v318 = vsel %vm224, %v312, 0
        %v321 = vsel %vm224, %v313, 0
        %323 = vmatpush.bf16.msra.mxu0 0
        %324 = vmatpush.bf16.msra.mxu0 0
        %325 = vmatpush.bf16.msra.mxu0 0
        %326 = vmatpush.bf16.msra.mxu0 0
        %327 = vmatpush.bf16.msra.mxu0 0
        %328 = vmatpush.bf16.msra.mxu0 0
        %329 = vmatpush.bf16.msra.mxu0 0
        %330 = vmatpush.bf16.msra.mxu0 %v318
        %331 = vmatmul.bf16.gmra.mxu0 %v315
        %v332 = vpop.f32.mrf.mxu0
        %v333 = vadd.f32 0.0, %v332
        %v334 = vpop.f32.mrf.mxu0
        %335 = vdwg.mxu0
        %336 = vmatpush.bf16.msra.mxu0 0
        %337 = vmatpush.bf16.msra.mxu0 0
        %338 = vmatpush.bf16.msra.mxu0 0
        %339 = vmatpush.bf16.msra.mxu0 0
        %340 = vmatpush.bf16.msra.mxu0 0
        %341 = vmatpush.bf16.msra.mxu0 0
        %342 = vmatpush.bf16.msra.mxu0 0
        %343 = vmatpush.bf16.msra.mxu0 %v321
        %344 = vmatmul.bf16.gmra.mxu0 %v315
        %v345 = vpop.f32.mrf.mxu0
        %v346 = vadd.f32 0.0, %v345
        %v347 = vpop.f32.mrf.mxu0
        %348 = vdwg.mxu0
        %v349 = vadd.f32 %v278, %v333
        %v350 = vadd.f32 %v291, %v346
        %vm351 = vcmp.ge.s32.totalorder %v196, 1
        %vm352 = vcmp.ge.s32.totalorder %v197, 1
        %v353 = vsel %vm351, %v349, 0.0
        %v354 = vsel %vm352, %v350, 0.0
        %v355 = vadd.f32 %v353, 0.0
        %v356 = vadd.f32 %v354, 0.0
        %v357 = vld [vmem:[%s168] sm:$0x3f]
        %s358 = scalar_lea.vmem %s1, 4
        %v359 = vld [vmem:[%s358] sm:$0xf]
        %s360 = scalar_lea.vmem %s1, 16
        %v361 = vld [vmem:[%s360] sm:$0xf]
        %363 = vst [vmem:[#allocation1] ss:$4 sm:$0xff] %v357
        %v364 = vld.sshfl [vmem:[#allocation1] sm:$0xff pattern:$0x73625140]
        %v366 = vld.sshfl [vmem:[#allocation1 + $0x8] sm:$0xff pattern:$0x73625140]
        %v368 = vld.sshfl [vmem:[#allocation1 + $0x10] sm:$0xff pattern:$0x73625140]
        %370 = vrot.lane.b32.xlu0 %v364, 111
        %v371 = vpop.permute.xlu0 %370
        %372 = vrot.lane.b32.xlu0 %v366, 111
        %v373 = vpop.permute.xlu0 %372
        %374 = vrot.lane.b32.xlu0 %v368, 111
        %v375 = vpop.permute.xlu0 %374
        %vm376 = vcmask 908288
        %v377 = vsel %vm376, %v371, %v373
        %v378 = vsel %vm376, %v373, %v375
        %v380 = vsel %vm220, %v361, 0
        %v383 = vsel %vm224, %v377, 0
        %v386 = vsel %vm224, %v378, 0
        %388 = vmatpush.bf16.msra.mxu0 0
        %389 = vmatpush.bf16.msra.mxu0 0
        %390 = vmatpush.bf16.msra.mxu0 0
        %391 = vmatpush.bf16.msra.mxu0 0
        %392 = vmatpush.bf16.msra.mxu0 0
        %393 = vmatpush.bf16.msra.mxu0 0
        %394 = vmatpush.bf16.msra.mxu0 0
        %395 = vmatpush.bf16.msra.mxu0 %v383
        %396 = vmatmul.bf16.gmra.mxu0 %v380
        %v397 = vpop.f32.mrf.mxu0
        %v398 = vadd.f32 0.0, %v397
        %v399 = vpop.f32.mrf.mxu0
        %400 = vdwg.mxu0
        %401 = vmatpush.bf16.msra.mxu0 0
        %402 = vmatpush.bf16.msra.mxu0 0
        %403 = vmatpush.bf16.msra.mxu0 0
        %404 = vmatpush.bf16.msra.mxu0 0
        %405 = vmatpush.bf16.msra.mxu0 0
        %406 = vmatpush.bf16.msra.mxu0 0
        %407 = vmatpush.bf16.msra.mxu0 0
        %408 = vmatpush.bf16.msra.mxu0 %v386
        %409 = vmatmul.bf16.gmra.mxu0 %v380
        %v410 = vpop.f32.mrf.mxu0
        %v411 = vadd.f32 0.0, %v410
        %v412 = vpop.f32.mrf.mxu0
        %413 = vdwg.mxu0
        %414 = vst [vmem:[#allocation1] ss:$4 sm:$0xff] %v357
        %v415 = vld.sshfl [vmem:[#allocation1] sm:$0xff pattern:$0x73625140]
        %v417 = vld.sshfl [vmem:[#allocation1 + $0x8] sm:$0xff pattern:$0x73625140]
        %v419 = vld.sshfl [vmem:[#allocation1 + $0x10] sm:$0xff pattern:$0x73625140]
        %421 = vrot.lane.b32.xlu0 %v415, 127
        %v422 = vpop.permute.xlu0 %421
        %423 = vrot.lane.b32.xlu0 %v417, 127
        %v424 = vpop.permute.xlu0 %423
        %425 = vrot.lane.b32.xlu0 %v419, 127
        %v426 = vpop.permute.xlu0 %425
        %vm427 = vcmask 1039360
        %v428 = vsel %vm427, %v422, %v424
        %v429 = vsel %vm427, %v424, %v426
        %v431 = vsel %vm220, %v359, 0
        %v434 = vsel %vm224, %v428, 0
        %v437 = vsel %vm224, %v429, 0
        %439 = vmatpush.bf16.msra.mxu0 0
        %440 = vmatpush.bf16.msra.mxu0 0
        %441 = vmatpush.bf16.msra.mxu0 0
        %442 = vmatpush.bf16.msra.mxu0 0
        %443 = vmatpush.bf16.msra.mxu0 0
        %444 = vmatpush.bf16.msra.mxu0 0
        %445 = vmatpush.bf16.msra.mxu0 0
        %446 = vmatpush.bf16.msra.mxu0 %v434
        %447 = vmatmul.bf16.gmra.mxu0 %v431
        %v448 = vpop.f32.mrf.mxu0
        %v449 = vadd.f32 %v398, %v448
        %v450 = vpop.f32.mrf.mxu0
        %451 = vdwg.mxu0
        %452 = vmatpush.bf16.msra.mxu0 0
        %453 = vmatpush.bf16.msra.mxu0 0
        %454 = vmatpush.bf16.msra.mxu0 0
        %455 = vmatpush.bf16.msra.mxu0 0
        %456 = vmatpush.bf16.msra.mxu0 0
        %457 = vmatpush.bf16.msra.mxu0 0
        %458 = vmatpush.bf16.msra.mxu0 0
        %459 = vmatpush.bf16.msra.mxu0 %v437
        %460 = vmatmul.bf16.gmra.mxu0 %v431
        %v461 = vpop.f32.mrf.mxu0
        %v462 = vadd.f32 %v411, %v461
        %v463 = vpop.f32.mrf.mxu0
        %464 = vdwg.mxu0
        %v465 = vld [vmem:[%s168] sm:$0x3f]
        %s466 = scalar_lea.vmem %s1, 28
        %v467 = vld [vmem:[%s466] sm:$0xf]
        %469 = vst [vmem:[#allocation1] ss:$4 sm:$0xff] %v465
        %v470 = vld.sshfl [vmem:[#allocation1] sm:$0xff pattern:$0x73625140]
        %v472 = vld.sshfl [vmem:[#allocation1 + $0x8] sm:$0xff pattern:$0x73625140]
        %v474 = vld.sshfl [vmem:[#allocation1 + $0x10] sm:$0xff pattern:$0x73625140]
        %476 = vrot.lane.b32.xlu0 %v470, 95
        %v477 = vpop.permute.xlu0 %476
        %478 = vrot.lane.b32.xlu0 %v472, 95
        %v479 = vpop.permute.xlu0 %478
        %480 = vrot.lane.b32.xlu0 %v474, 95
        %v481 = vpop.permute.xlu0 %480
        %vm482 = vcmask 777216
        %v483 = vsel %vm482, %v477, %v479
        %v484 = vsel %vm482, %v479, %v481
        %v486 = vsel %vm220, %v467, 0
        %v489 = vsel %vm224, %v483, 0
        %v492 = vsel %vm224, %v484, 0
        %494 = vmatpush.bf16.msra.mxu0 0
        %495 = vmatpush.bf16.msra.mxu0 0
        %496 = vmatpush.bf16.msra.mxu0 0
        %497 = vmatpush.bf16.msra.mxu0 0
        %498 = vmatpush.bf16.msra.mxu0 0
        %499 = vmatpush.bf16.msra.mxu0 0
        %500 = vmatpush.bf16.msra.mxu0 0
        %501 = vmatpush.bf16.msra.mxu0 %v489
        %502 = vmatmul.bf16.gmra.mxu0 %v486
        %v503 = vpop.f32.mrf.mxu0
        %v504 = vadd.f32 0.0, %v503
        %v505 = vpop.f32.mrf.mxu0
        %506 = vdwg.mxu0
        %507 = vmatpush.bf16.msra.mxu0 0
        %508 = vmatpush.bf16.msra.mxu0 0
        %509 = vmatpush.bf16.msra.mxu0 0
        %510 = vmatpush.bf16.msra.mxu0 0
        %511 = vmatpush.bf16.msra.mxu0 0
        %512 = vmatpush.bf16.msra.mxu0 0
        %513 = vmatpush.bf16.msra.mxu0 0
        %514 = vmatpush.bf16.msra.mxu0 %v492
        %515 = vmatmul.bf16.gmra.mxu0 %v486
        %v516 = vpop.f32.mrf.mxu0
        %v517 = vadd.f32 0.0, %v516
        %v518 = vpop.f32.mrf.mxu0
        %519 = vdwg.mxu0
        %v520 = vadd.f32 %v449, %v504
        %v521 = vadd.f32 %v462, %v517
        %v522 = vadd.f32 %v355, %v520
        %v523 = vadd.f32 %v356, %v521
        %v524 = vld [vmem:[%s168] sm:$0x3f]
        %s525 = scalar_lea.vmem %s1, 8
        %v526 = vld [vmem:[%s525] sm:$0xf]
        %s527 = scalar_lea.vmem %s1, 20
        %v528 = vld [vmem:[%s527] sm:$0xf]
        %530 = vst [vmem:[#allocation1] ss:$4 sm:$0xff] %v524
        %v531 = vld.sshfl [vmem:[#allocation1] sm:$0xff pattern:$0x73625140]
        %v533 = vld.sshfl [vmem:[#allocation1 + $0x8] sm:$0xff pattern:$0x73625140]
        %v535 = vld.sshfl [vmem:[#allocation1 + $0x10] sm:$0xff pattern:$0x73625140]
        %537 = vrot.lane.b32.xlu0 %v531, 110
        %v538 = vpop.permute.xlu0 %537
        %539 = vrot.lane.b32.xlu0 %v533, 110
        %v540 = vpop.permute.xlu0 %539
        %541 = vrot.lane.b32.xlu0 %v535, 110
        %v542 = vpop.permute.xlu0 %541
        %vm543 = vcmask 900096
        %v544 = vsel %vm543, %v538, %v540
        %v545 = vsel %vm543, %v540, %v542
        %v547 = vsel %vm220, %v528, 0
        %v550 = vsel %vm224, %v544, 0
        %v553 = vsel %vm224, %v545, 0
        %555 = vmatpush.bf16.msra.mxu0 0
        %556 = vmatpush.bf16.msra.mxu0 0
        %557 = vmatpush.bf16.msra.mxu0 0
        %558 = vmatpush.bf16.msra.mxu0 0
        %559 = vmatpush.bf16.msra.mxu0 0
        %560 = vmatpush.bf16.msra.mxu0 0
        %561 = vmatpush.bf16.msra.mxu0 0
        %562 = vmatpush.bf16.msra.mxu0 %v550
        %563 = vmatmul.bf16.gmra.mxu0 %v547
        %v564 = vpop.f32.mrf.mxu0
        %v565 = vadd.f32 0.0, %v564
        %v566 = vpop.f32.mrf.mxu0
        %567 = vdwg.mxu0
        %568 = vmatpush.bf16.msra.mxu0 0
        %569 = vmatpush.bf16.msra.mxu0 0
        %570 = vmatpush.bf16.msra.mxu0 0
        %571 = vmatpush.bf16.msra.mxu0 0
        %572 = vmatpush.bf16.msra.mxu0 0
        %573 = vmatpush.bf16.msra.mxu0 0
        %574 = vmatpush.bf16.msra.mxu0 0
        %575 = vmatpush.bf16.msra.mxu0 %v553
        %576 = vmatmul.bf16.gmra.mxu0 %v547
        %v577 = vpop.f32.mrf.mxu0
        %v578 = vadd.f32 0.0, %v577
        %v579 = vpop.f32.mrf.mxu0
        %580 = vdwg.mxu0
        %581 = vst [vmem:[#allocation1] ss:$4 sm:$0xff] %v524
        %v582 = vld.sshfl [vmem:[#allocation1] sm:$0xff pattern:$0x73625140]
        %v584 = vld.sshfl [vmem:[#allocation1 + $0x8] sm:$0xff pattern:$0x73625140]
        %v586 = vld.sshfl [vmem:[#allocation1 + $0x10] sm:$0xff pattern:$0x73625140]
        %588 = vrot.lane.b32.xlu0 %v582, 126
        %v589 = vpop.permute.xlu0 %588
        %590 = vrot.lane.b32.xlu0 %v584, 126
        %v591 = vpop.permute.xlu0 %590
        %592 = vrot.lane.b32.xlu0 %v586, 126
        %v593 = vpop.permute.xlu0 %592
        %vm594 = vcmask 1031168
        %v595 = vsel %vm594, %v589, %v591
        %v596 = vsel %vm594, %v591, %v593
        %v598 = vsel %vm220, %v526, 0
        %v601 = vsel %vm224, %v595, 0
        %v604 = vsel %vm224, %v596, 0
        %606 = vmatpush.bf16.msra.mxu0 0
        %607 = vmatpush.bf16.msra.mxu0 0
        %608 = vmatpush.bf16.msra.mxu0 0
        %609 = vmatpush.bf16.msra.mxu0 0
        %610 = vmatpush.bf16.msra.mxu0 0
        %611 = vmatpush.bf16.msra.mxu0 0
        %612 = vmatpush.bf16.msra.mxu0 0
        %613 = vmatpush.bf16.msra.mxu0 %v601
        %614 = vmatmul.bf16.gmra.mxu0 %v598
        %v615 = vpop.f32.mrf.mxu0
        %v616 = vadd.f32 %v565, %v615
        %v617 = vpop.f32.mrf.mxu0
        %618 = vdwg.mxu0
        %619 = vmatpush.bf16.msra.mxu0 0
        %620 = vmatpush.bf16.msra.mxu0 0
        %621 = vmatpush.bf16.msra.mxu0 0
        %622 = vmatpush.bf16.msra.mxu0 0
        %623 = vmatpush.bf16.msra.mxu0 0
        %624 = vmatpush.bf16.msra.mxu0 0
        %625 = vmatpush.bf16.msra.mxu0 0
        %626 = vmatpush.bf16.msra.mxu0 %v604
        %627 = vmatmul.bf16.gmra.mxu0 %v598
        %v628 = vpop.f32.mrf.mxu0
        %v629 = vadd.f32 %v578, %v628
        %v630 = vpop.f32.mrf.mxu0
        %631 = vdwg.mxu0
        %v632 = vld [vmem:[%s168] sm:$0x3f]
        %s633 = scalar_lea.vmem %s1, 32
        %v634 = vld [vmem:[%s633] sm:$0xf]
        %636 = vst [vmem:[#allocation1] ss:$4 sm:$0xff] %v632
        %v637 = vld.sshfl [vmem:[#allocation1] sm:$0xff pattern:$0x73625140]
        %v639 = vld.sshfl [vmem:[#allocation1 + $0x8] sm:$0xff pattern:$0x73625140]
        %v641 = vld.sshfl [vmem:[#allocation1 + $0x10] sm:$0xff pattern:$0x73625140]
        %643 = vrot.lane.b32.xlu0 %v637, 94
        %v644 = vpop.permute.xlu0 %643
        %645 = vrot.lane.b32.xlu0 %v639, 94
        %v646 = vpop.permute.xlu0 %645
        %647 = vrot.lane.b32.xlu0 %v641, 94
        %v648 = vpop.permute.xlu0 %647
        %vm649 = vcmask 769024
        %v650 = vsel %vm649, %v644, %v646
        %v651 = vsel %vm649, %v646, %v648
        %v653 = vsel %vm220, %v634, 0
        %v656 = vsel %vm224, %v650, 0
        %v659 = vsel %vm224, %v651, 0
        %661 = vmatpush.bf16.msra.mxu0 0
        %662 = vmatpush.bf16.msra.mxu0 0
        %663 = vmatpush.bf16.msra.mxu0 0
        %664 = vmatpush.bf16.msra.mxu0 0
        %665 = vmatpush.bf16.msra.mxu0 0
        %666 = vmatpush.bf16.msra.mxu0 0
        %667 = vmatpush.bf16.msra.mxu0 0
        %668 = vmatpush.bf16.msra.mxu0 %v656
        %669 = vmatmul.bf16.gmra.mxu0 %v653
        %v670 = vpop.f32.mrf.mxu0
        %v671 = vadd.f32 0.0, %v670
        %v672 = vpop.f32.mrf.mxu0
        %673 = vdwg.mxu0
        %674 = vmatpush.bf16.msra.mxu0 0
        %675 = vmatpush.bf16.msra.mxu0 0
        %676 = vmatpush.bf16.msra.mxu0 0
        %677 = vmatpush.bf16.msra.mxu0 0
        %678 = vmatpush.bf16.msra.mxu0 0
        %679 = vmatpush.bf16.msra.mxu0 0
        %680 = vmatpush.bf16.msra.mxu0 0
        %681 = vmatpush.bf16.msra.mxu0 %v659
        %682 = vmatmul.bf16.gmra.mxu0 %v653
        %v683 = vpop.f32.mrf.mxu0
        %v684 = vadd.f32 0.0, %v683
        %v685 = vpop.f32.mrf.mxu0
        %686 = vdwg.mxu0
        %v687 = vadd.f32 %v616, %v671
        %v688 = vadd.f32 %v629, %v684
        %vm689 = vcmp.le.s32.totalorder %v196, 14
        %vm690 = vcmp.le.s32.totalorder %v197, 14
        %v691 = vsel %vm689, %v687, 0.0
        %v692 = vsel %vm690, %v688, 0.0
        %v693 = vadd.f32 %v522, %v691
        %v694 = vadd.f32 %v523, %v692
        %696 = vset.pattern.permute.xlu0 0
        %697 = vperm.xlu0 %696, %v170
        %v698 = vpop.permute.xlu0 %697
        %v700 = vadd.f32 %v693, %v698
        %v701 = vadd.f32 %v694, %v698
        %v702 = vadd.f32 %v700, %v701
        %703 = vadd.xlane.f32.xlu0 %v702
        %v704 = vpop.xlane.xlu0 %703
        %v705 = vmul.f32 %v704, 0.00390625
        %v706 = vsub.f32 %v700, %v705
        %v707 = vsub.f32 %v701, %v705
        %v708 = vmul.f32 %v706, %v706
        %v709 = vmul.f32 %v707, %v707
        %v710 = vadd.f32 %v708, %v709
        %711 = vadd.xlane.f32.xlu0 %v710
        %v712 = vpop.xlane.xlu0 %711
        %v713 = vmul.f32 %v712, 0.00390625
        %v714 = vadd.f32 %v713, 1e-05
        %v715 = vrsqrt.pop %v714
        %v716 = vmul.f32 %v715, %v714
        %v717 = vmul.f32 %v716, %v715
        %v718 = vmul.f32 0.5, %v717
        %v719 = vsub.f32 1.5, %v718
        %v720 = vmul.f32 %v715, %v719
        %vm721 = vweird.f32 %v714
        %vm722 = vweird.f32 %v715
        %vm723 = vmor %vm721, %vm722
        %v724 = vsel %vm723, %v715, %v720
        %v725 = vmul.f32 %v724, %v170
        %727 = vset.pattern.permute.xlu0 1
        %728 = vperm.xlu0 %727, %v725
        %v729 = vpop.permute.xlu0 %728
        %v731 = vmul.f32 %v706, %v729
        %v732 = vmul.f32 %v707, %v729
        %733 = vset.pattern.permute.xlu0 2
        %734 = vperm.xlu0 %733, %v170
        %v735 = vpop.permute.xlu0 %734
        %v737 = vadd.f32 %v731, %v735
        %v738 = vadd.f32 %v732, %v735
        %vm739 = vcmp.gt.f32.partialorder %v737, 0.0
        %vm740 = vcmp.gt.f32.partialorder %v738, 0.0
        %v741 = vmin.f32 %v737, 0.0
        %v742 = vmin.f32 %v738, 0.0
        %v743 = vmul.f32 %v741, 1.442695
        %v744 = vpow.pop %v743
        %v745 = vmul.f32 %v742, 1.442695
        %v746 = vpow.pop %v745
        %v747 = vsub.f32 %v744, 1.0
        %v748 = vsub.f32 %v746, 1.0
        %v749 = vsel %vm739, %v737, %v747
        %v750 = vsel %vm740, %v738, %v748
        %751 = vst [vmem:[%s163] sm:$0xff] %v749
        %752 = vst [vmem:[%s163 + $0x8] sm:$0xff] %v750
        %s753 = sand.u32 %s93, 1
        %s754 = scalar_lea.sflag [#allocation3], %s753
        %s755 = sand.u32 %s93, 1
        %s756 = smul.addr %s755, 16
        %s757 = scalar_lea.vmem [#allocation2], %s756
        // Predicated region
        $region33: #{tpu_custom_call.1} parent=31 // pred_check
          %p758 = pneg %p103
        $region34: #{tpu_custom_call.1} parent=31 // pred_check_branch
          %760 = sbr.rel (%p758) target = $region36
        $region35: #{tpu_custom_call.1} parent=31 // pred_region
          %762 = vsyncadd %s754, 0
          %s763 = smul.addr %s17, 2
          %s764 = smul.addr %s763, 8
          %s765 = scalar_lea.hbm %s3, %s764
          %s767 = sshll.u32 %s757, 4
          %s768 = int_to_ptr.vmem [resolvable:$true] %s767
          %s769 = sshll.u32 %s765, 4
          %s770 = int_to_ptr.hbm [resolvable:$true] %s769
          %772 = dma.vmem_to_hbm [thread:$0]  %s768, 256, %s770, %s754
        $region36: #{tpu_custom_call.1} parent=31 // pred_fallthru
          _
      $region32: #{tpu_custom_call.1} parent=5 // pred_fallthru
        _
      %p773 = scmp.le.s32.totalorder 2, %s12
      // Predicated region
      $region37: #{tpu_custom_call.1} parent=5 // pred_check
        %p774 = pneg %p773
      $region38: #{tpu_custom_call.1} parent=5 // pred_check_branch
        %776 = sbr.rel (%p774) target = $region40
      $region39: #{tpu_custom_call.1} parent=5 // pred_region
        %s777 = ssub.s32 %s12, 2
        // Predicated region
        $region41: #{tpu_custom_call.1} parent=39 // pred_check
          %p778 = pneg %p109
        $region42: #{tpu_custom_call.1} parent=39 // pred_check_branch
          %780 = sbr.rel (%p778) target = $region44
        $region43: #{tpu_custom_call.1} parent=39 // pred_region
          %s781 = sand.u32 %s94, 1
          %s782 = scalar_lea.sflag [#allocation3], %s781
          %s783 = sand.u32 %s94, 1
          %s784 = smul.addr %s783, 16
          %s785 = scalar_lea.vmem [#allocation2], %s784
          %787 = dma.done %s782, 256
        $region44: #{tpu_custom_call.1} parent=39 // pred_fallthru
          _
      $region40: #{tpu_custom_call.1} parent=5 // pred_fallthru
        _
    $region6: #{tpu_custom_call.1} parent=1 // loop_footer
      %s16 = sadd.s32 1, %s12
    $region7: #{tpu_custom_call.1} parent=1 // loop_footer_branch
      %11 = sbr.rel target = $region3
    $region8: #{tpu_custom_call.1} parent=1 // loop_exit
      _
    %788 = vsyncpa [#allocation3], 1
    %s789 = scalar_lea.sflag [#allocation3], 1
    %790 = vsyncpa %s789, 1

</llo_original>
